<compile_context>
chip_gen: v7x
topology: tpu7x:2x2x1
jax: 0.10.0
libtpu: 0.0.40
codegen_flags: <defaults>
</compile_context>

<pallas_src>
import math

import jax
import jax.numpy as jnp
from jax.experimental import pallas as pl
from jax.experimental.pallas import tpu as pltpu


# 48 MiB fits under v7x's 64 MiB physical VMEM; raise toward ~100 MiB on v5e/v6e
# (128 MiB physical) together with a larger seq tile if desired.
_VMEM_LIMIT_BYTES = 48 * 1024 * 1024


# ---------------------------------------------------------------------------
# In-kernel helpers
# ---------------------------------------------------------------------------

def _layernorm(x, g, b, eps):
    mean = jnp.mean(x, axis=-1, keepdims=True)
    xc = x - mean
    var = jnp.mean(xc * xc, axis=-1, keepdims=True)
    return xc * jax.lax.rsqrt(var + eps) * g + b


def _gelu_tanh(x):
    # TODO(synk): PyTorch F.gelu defaults to the exact erf form; tanh approximation
    # (max abs deviation ~3e-4) is used to stay on TPU-native transcendentals.
    return 0.5 * x * (1.0 + jnp.tanh(0.7978845608028654 * (x + 0.044715 * x * x * x)))


# ---------------------------------------------------------------------------
# Kernels
# ---------------------------------------------------------------------------

def _gn_proj_kernel(x_ref, scale_ref, shift_ref, w_ref, b_ref, o_ref):
    """Apply precomputed GroupNorm scale/shift + 1x1-conv projection (seq tile)."""
    x = x_ref[0].astype(jnp.float32)                          # (ts, C)
    y = (x * scale_ref[0] + shift_ref[0]).astype(jnp.bfloat16)
    o_ref[0] = (jnp.dot(y, w_ref[...], preferred_element_type=jnp.float32)
                + b_ref[...]).astype(o_ref.dtype)


def _make_ln_mm_kernel(eps):
    """LayerNorm + packed [Wk|Wv] matmul (bf16 operands, bf16 output)."""

    def kernel(x_ref, g_ref, b_ref, w_ref, o_ref):
        y = _layernorm(x_ref[0].astype(jnp.float32), g_ref[...], b_ref[...], eps)
        o_ref[0] = jnp.dot(y.astype(jnp.bfloat16), w_ref[...],
                           preferred_element_type=jnp.float32).astype(o_ref.dtype)

    return kernel


def _mm_kernel(x_ref, w_ref, o_ref):
    """Plain matmul — packed [Wk|Wv] projection of the raw cross-attn context."""
    o_ref[0] = jnp.dot(x_ref[0].astype(jnp.bfloat16), w_ref[...],
                       preferred_element_type=jnp.float32).astype(o_ref.dtype)


def _mm_bias_res_kernel(x_ref, w_ref, b_ref, res_ref, o_ref):
    """matmul + bias + residual add, fused epilogue (proj_out + x_in)."""
    out = jnp.dot(x_ref[0].astype(jnp.bfloat16), w_ref[...],
                  preferred_element_type=jnp.float32) + b_ref[...]
    o_ref[0] = (out + res_ref[0].astype(jnp.float32)).astype(o_ref.dtype)


def _make_fused_attn_kernel(heads, dh, eps):
    """LN + Q-proj + multi-head softmax attention + out-proj + bias + residual.

    One invocation handles one (batch, q-tile); packed KV for the full key
    sequence arrives as a bf16 block.
    """
    scale = 1.0 / math.sqrt(dh)
    inner = heads * dh

    def kernel(x_ref, g_ref, b_ref, wq_ref, kv_ref, wo_ref, bo_ref, o_ref, attn_scr):
        x = x_ref[0].astype(jnp.float32)                       # (tq, inner)
        y = _layernorm(x, g_ref[...], b_ref[...], eps).astype(jnp.bfloat16)
        # Scale Q once on the (tq, inner) tile instead of every score matrix.
        q = (jnp.dot(y, wq_ref[...], preferred_element_type=jnp.float32)
             * scale).astype(jnp.bfloat16)
        kv = kv_ref[0]                                         # (Sk, 2*inner) bf16
        k = kv[:, :inner]
        v = kv[:, inner:]
        dn = (((1,), (1,)), ((), ()))                          # contract head dim
        for h in range(heads):                                 # static unroll
            lo, hi = h * dh, (h + 1) * dh
            s = jax.lax.dot_general(q[:, lo:hi], k[:, lo:hi], dn,
                                    preferred_element_type=jnp.float32)
            s = s - jnp.max(s, axis=-1, keepdims=True)
            p = jnp.exp(s)
            inv = pl.reciprocal(jnp.sum(p, axis=-1, keepdims=True), approx=True)
            p = (p * inv).astype(jnp.bfloat16)                 # bf16 probs for p@v
            # Write each head's output into the VMEM slab (no lane-dim concat).
            attn_scr[:, lo:hi] = jnp.dot(
                p, v[:, lo:hi], preferred_element_type=jnp.float32
            ).astype(attn_scr.dtype)
        out = jnp.dot(attn_scr[...], wo_ref[...],
                      preferred_element_type=jnp.float32) + bo_ref[...]
        o_ref[0] = (out + x).astype(o_ref.dtype)

    return kernel


def _make_ff_kernel(eps, ck):
    """LayerNorm + GEGLU feed-forward + residual, reduced over ff_inner chunks."""

    def kernel(x_ref, g_ref, bln_ref, w1_ref, b1_ref, w2_ref, b2_ref, o_ref,
               y_scr, acc_scr):
        kc = pl.program_id(2)

        @pl.when(kc == 0)
        def _():
            y = _layernorm(x_ref[0].astype(jnp.float32), g_ref[...], bln_ref[...], eps)
            y_scr[...] = y.astype(jnp.bfloat16)
            acc_scr[...] = jnp.zeros_like(acc_scr)

        hck = (jnp.dot(y_scr[...], w1_ref[0], preferred_element_type=jnp.float32)
               + b1_ref[0])                                    # (ts, 2*ck)
        a = hck[:, :ck]
        gate = hck[:, ck:]
        z = (a * _gelu_tanh(gate)).astype(jnp.bfloat16)
        acc_scr[...] += jnp.dot(z, w2_ref[0], preferred_element_type=jnp.float32)

        @pl.when(kc == pl.num_programs(2) - 1)
        def _():
            o_ref[0] = (acc_scr[...] + b2_ref[...]
                        + x_ref[0].astype(jnp.float32)).astype(o_ref.dtype)

    return kernel


# ---------------------------------------------------------------------------
# Parameter preparation (done once, outside the forward)
# ---------------------------------------------------------------------------

def _pick_ff_chunk(ff_inner, target=512):
    if ff_inner <= target:
        return ff_inner
    for c in range(target, 0, -1):
        if ff_inner % c == 0 and c % 128 == 0:
            return c
    for c in range(target, 0, -1):
        if ff_inner % c == 0 and c % 8 == 0:
            return c
    return ff_inner


def prepare_spatial_transformer_params(params, *, ff_chunk=None,
                                        weight_dtype=jnp.bfloat16):
    """Pack QKV/KV weights, chunk+reorder FF weights, cast matmul operands to bf16."""

    def w(v):
        return v.astype(weight_dtype)

    def row(v):
        return v.reshape(1, -1).astype(jnp.float32)

    prepared = dict(
        gn_gamma=params['gn_gamma'].astype(jnp.float32),
        gn_beta=params['gn_beta'].astype(jnp.float32),
        w_in=w(params['w_in']), b_in=row(params['b_in']),
        w_out=w(params['w_out']), b_out=row(params['b_out']),
        blocks=[],
    )
    for blk in params['blocks']:
        ff_inner, inner = blk['w_ff2'].shape
        ck = _pick_ff_chunk(ff_inner) if ff_chunk is None else ff_chunk
        assert ff_inner % ck == 0, (ff_inner, ck)
        nck = ff_inner // ck
        # Reorder w_ff1/b_ff1 so chunk c's `a` and `gate` columns are adjacent.
        wa = blk['w_ff1'][:, :ff_inner].reshape(inner, nck, ck)
        wg = blk['w_ff1'][:, ff_inner:].reshape(inner, nck, ck)
        w1 = jnp.transpose(jnp.concatenate([wa, wg], axis=-1), (1, 0, 2))
        ba = blk['b_ff1'][:ff_inner].reshape(nck, 1, ck)
        bg = blk['b_ff1'][ff_inner:].reshape(nck, 1, ck)
        b1 = jnp.concatenate([ba, bg], axis=-1).astype(jnp.float32)
        prepared['blocks'].append(dict(
            ln1_g=row(blk['ln1_g']), ln1_b=row(blk['ln1_b']),
            w_q1=w(blk['w_q1']),
            w_kv1=w(jnp.concatenate([blk['w_k1'], blk['w_v1']], axis=1)),
            w_o1=w(blk['w_o1']), b_o1=row(blk['b_o1']),
            ln2_g=row(blk['ln2_g']), ln2_b=row(blk['ln2_b']),
            w_q2=w(blk['w_q2']),
            w_kv2=w(jnp.concatenate([blk['w_k2'], blk['w_v2']], axis=1)),
            w_o2=w(blk['w_o2']), b_o2=row(blk['b_o2']),
            ln3_g=row(blk['ln3_g']), ln3_b=row(blk['ln3_b']),
            w_ff1=w(w1), b_ff1=b1,
            w_ff2=w(blk['w_ff2'].reshape(nck, ck, inner)),
            b_ff2=row(blk['b_ff2']),
            ff_chunk=ck, ff_chunks=nck,
        ))
    return prepared


# ---------------------------------------------------------------------------
# Forward wrapper
# ---------------------------------------------------------------------------

def _pick_seq_tile(s, target=512):
    """Largest multiple-of-8 divisor of s <= target; prefer >= 2 tiles for megacore."""
    best = None
    for t in range(min(s, target), 7, -1):
        if s % t == 0 and t % 8 == 0:
            best = t
            break
    if best is None:
        # TODO(synk): masked tail tile for spatial sizes with no multiple-of-8 divisor.
        return s
    if best == s and s > 8:
        for t in range(min(s // 2, target), 7, -1):
            if s % t == 0 and t % 8 == 0:
                return t
    return best


def spatial_transformer_forward(x, context, params, *, n_heads, d_head,
                                num_groups=32, gn_eps=1e-6, ln_eps=1e-5,
                                seq_tile=512,
                                vmem_limit_bytes=_VMEM_LIMIT_BYTES):
    """SpatialTransformer.forward (use_linear=False). x: (B, C, H, W) NCHW.

    `params` must be the output of `prepare_spatial_transformer_params`.
    """
    # TODO(synk): context=None fallback for attn2, use_linear=True path, dropout>0
    # and the xformers max_bs chunking are not implemented (not needed at inference).
    b, c, hh, ww = x.shape
    s = hh * ww
    inner = n_heads * d_head
    dtype = x.dtype
    sc, cdim = context.shape[1], context.shape[2]

    ts = _pick_seq_tile(s, seq_tile)
    n_st = s // ts

    sem1 = pltpu.CompilerParams(dimension_semantics=("parallel",),
                                vmem_limit_bytes=vmem_limit_bytes)
    sem2 = pltpu.CompilerParams(dimension_semantics=("parallel", "parallel"),
                                vmem_limit_bytes=vmem_limit_bytes)
    sem3 = pltpu.CompilerParams(
        dimension_semantics=("parallel", "parallel", "arbitrary"),
        vmem_limit_bytes=vmem_limit_bytes)

    def act2(dd):          # (B, S, dd) activation tiled over (batch, seq)
        return pl.BlockSpec((1, ts, dd), lambda i, j: (i, j, 0))

    def fix1(shape):
        z = (0,) * len(shape)
        return pl.BlockSpec(shape, lambda i: z)

    def fix2(shape):
        z = (0,) * len(shape)
        return pl.BlockSpec(shape, lambda i, j: z)

    def fix3(shape):
        z = (0,) * len(shape)
        return pl.BlockSpec(shape, lambda i, j, k: z)

    # ---- NCHW -> (B, S, C) channels-last (single layout change at the boundary) ----
    x_sl = jnp.transpose(x, (0, 2, 3, 1)).reshape(b, s, c)

    # ---- GroupNorm statistics in XLA (centered variance — avoids E[x^2]-E[x]^2
    #      cancellation), folded with gamma/beta into per-(batch, channel) scale/shift.
    cg = c // num_groups
    xg = x.astype(jnp.float32).reshape(b, num_groups, cg, hh, ww)
    g_mean = xg.mean(axis=(2, 3, 4))                       # (B, G)
    g_var = jnp.var(xg, axis=(2, 3, 4))                    # (B, G), centered
    inv = jax.lax.rsqrt(g_var + gn_eps)
    inv_c = jnp.repeat(inv, cg, axis=1)                    # (B, C)
    mean_c = jnp.repeat(g_mean, cg, axis=1)
    gamma = params['gn_gamma'][None, :]
    beta = params['gn_beta'][None, :]
    gn_scale = (inv_c * gamma).reshape(b, 1, c)
    gn_shift = (beta - mean_c * inv_c * gamma).reshape(b, 1, c)

    # ---- GroupNorm apply + proj_in (1x1 conv == per-pixel matmul), seq-tiled ----
    h = pl.pallas_call(
        _gn_proj_kernel,
        out_shape=jax.ShapeDtypeStruct((b, s, inner), dtype),
        grid_spec=pltpu.PrefetchScalarGridSpec(
            num_scalar_prefetch=0, grid=(b, n_st),
            in_specs=[act2(c),
                      pl.BlockSpec((1, 1, c), lambda i, j: (i, 0, 0)),
                      pl.BlockSpec((1, 1, c), lambda i, j: (i, 0, 0)),
                      fix2((c, inner)), fix2((1, inner))],
            out_specs=act2(inner)),
        compiler_params=sem2,
    )(x_sl, gn_scale, gn_shift, params['w_in'], params['b_in'])

    attn_kernel = _make_fused_attn_kernel(n_heads, d_head, ln_eps)

    def fused_attention(xx, kv, ln_g, ln_b, w_q, w_o, b_o):
        sk = kv.shape[1]
        # TODO(synk): for very long sequences, tile the key axis with an online
        # softmax to bound the KV working set (v7x 64 MiB VMEM); KV is bf16 here.
        return pl.pallas_call(
            attn_kernel,
            out_shape=jax.ShapeDtypeStruct((b, s, inner), dtype),
            grid_spec=pltpu.PrefetchScalarGridSpec(
                num_scalar_prefetch=0, grid=(b, n_st),
                in_specs=[act2(inner), fix2((1, inner)), fix2((1, inner)),
                          fix2((inner, inner)),
                          pl.BlockSpec((1, sk, 2 * inner), lambda i, j: (i, 0, 0)),
                          fix2((inner, inner)), fix2((1, inner))],
                out_specs=act2(inner),
                scratch_shapes=[pltpu.VMEM((ts, inner), jnp.bfloat16)]),
            compiler_params=sem2,
        )(xx, ln_g, ln_b, w_q, kv, w_o, b_o)

    # ---- transformer block(s) ----
    for blk in params['blocks']:
        # attn1 (self): full-sequence packed KV (LN + [Wk|Wv]) then fused attention
        kv1 = pl.pallas_call(
            _make_ln_mm_kernel(ln_eps),
            out_shape=jax.ShapeDtypeStruct((b, s, 2 * inner), jnp.bfloat16),
            grid_spec=pltpu.PrefetchScalarGridSpec(
                num_scalar_prefetch=0, grid=(b, n_st),
                in_specs=[act2(inner), fix2((1, inner)), fix2((1, inner)),
                          fix2((inner, 2 * inner))],
                out_specs=act2(2 * inner)),
            compiler_params=sem2,
        )(h, blk['ln1_g'], blk['ln1_b'], blk['w_kv1'])

        h = fused_attention(h, kv1, blk['ln1_g'], blk['ln1_b'],
                            blk['w_q1'], blk['w_o1'], blk['b_o1'])

        # attn2 (cross): packed KV from the raw context, then fused attention
        kv2 = pl.pallas_call(
            _mm_kernel,
            out_shape=jax.ShapeDtypeStruct((b, sc, 2 * inner), jnp.bfloat16),
            grid_spec=pltpu.PrefetchScalarGridSpec(
                num_scalar_prefetch=0, grid=(b,),
                in_specs=[pl.BlockSpec((1, sc, cdim), lambda i: (i, 0, 0)),
                          fix1((cdim, 2 * inner))],
                out_specs=pl.BlockSpec((1, sc, 2 * inner), lambda i: (i, 0, 0))),
            compiler_params=sem1,
        )(context, blk['w_kv2'])

        h = fused_attention(h, kv2, blk['ln2_g'], blk['ln2_b'],
                            blk['w_q2'], blk['w_o2'], blk['b_o2'])

        # feed-forward: LN + GEGLU + residual, reduced over ff_inner chunks
        ck, nck = blk['ff_chunk'], blk['ff_chunks']
        h = pl.pallas_call(
            _make_ff_kernel(ln_eps, ck),
            out_shape=jax.ShapeDtypeStruct((b, s, inner), dtype),
            grid_spec=pltpu.PrefetchScalarGridSpec(
                num_scalar_prefetch=0, grid=(b, n_st, nck),
                in_specs=[pl.BlockSpec((1, ts, inner), lambda i, j, k: (i, j, 0)),
                          fix3((1, inner)), fix3((1, inner)),
                          pl.BlockSpec((1, inner, 2 * ck), lambda i, j, k: (k, 0, 0)),
                          pl.BlockSpec((1, 1, 2 * ck), lambda i, j, k: (k, 0, 0)),
                          pl.BlockSpec((1, ck, inner), lambda i, j, k: (k, 0, 0)),
                          fix3((1, inner))],
                out_specs=pl.BlockSpec((1, ts, inner), lambda i, j, k: (i, j, 0)),
                scratch_shapes=[pltpu.VMEM((ts, inner), jnp.bfloat16),
                                pltpu.VMEM((ts, inner), jnp.float32)]),
            compiler_params=sem3,
        )(h, blk['ln3_g'], blk['ln3_b'], blk['w_ff1'], blk['b_ff1'],
          blk['w_ff2'], blk['b_ff2'])

    # ---- proj_out (1x1 conv) + final residual with x_in, fused ----
    y_sl = pl.pallas_call(
        _mm_bias_res_kernel,
        out_shape=jax.ShapeDtypeStruct((b, s, c), dtype),
        grid_spec=pltpu.PrefetchScalarGridSpec(
            num_scalar_prefetch=0, grid=(b, n_st),
            in_specs=[act2(inner), fix2((inner, c)), fix2((1, c)), act2(c)],
            out_specs=act2(c)),
        compiler_params=sem2,
    )(h, params['w_out'], params['b_out'], x_sl)

    return jnp.transpose(y_sl.reshape(b, hh, ww, c), (0, 3, 1, 2))


# ---------------------------------------------------------------------------
# Pure-JAX f32 reference (mirrors the PyTorch module forward)
# ---------------------------------------------------------------------------

def _reference(x, context, params, *, n_heads, d_head, num_groups=32):
    b, c, hh, ww = x.shape
    inner = n_heads * d_head
    x_in = x

    xg = x.reshape(b, num_groups, c // num_groups, hh, ww)
    mean = xg.mean(axis=(2, 3, 4), keepdims=True)
    var = xg.var(axis=(2, 3, 4), keepdims=True)
    xn = ((xg - mean) / jnp.sqrt(var + 1e-6)).reshape(b, c, hh, ww)
    xn = xn * params['gn_gamma'][None, :, None, None] + params['gn_beta'][None, :, None, None]

    h = jnp.einsum('bchw,cd->bhwd', xn, params['w_in']) + params['b_in']
    h = h.reshape(b, hh * ww, inner)

    def ln(z, g, bb):
        m = z.mean(-1, keepdims=True)
        v = z.var(-1, keepdims=True)
        return (z - m) / jnp.sqrt(v + 1e-5) * g + bb

    def mha(q, k, v):
        def split(t):
            return t.reshape(b, t.shape[1], n_heads, d_head).transpose(0, 2, 1, 3)
        qh, kh, vh = split(q), split(k), split(v)
        scores = jnp.einsum('bhqd,bhkd->bhqk', qh, kh) / math.sqrt(d_head)
        p = jax.nn.softmax(scores, axis=-1)
        o = jnp.einsum('bhqk,bhkd->bhqd', p, vh)
        return o.transpose(0, 2, 1, 3).reshape(b, q.shape[1], inner)

    for blk in params['blocks']:
        n1 = ln(h, blk['ln1_g'], blk['ln1_b'])
        h = mha(n1 @ blk['w_q1'], n1 @ blk['w_k1'], n1 @ blk['w_v1']) @ blk['w_o1'] + blk['b_o1'] + h
        n2 = ln(h, blk['ln2_g'], blk['ln2_b'])
        h = mha(n2 @ blk['w_q2'], context @ blk['w_k2'], context @ blk['w_v2']) @ blk['w_o2'] + blk['b_o2'] + h
        n3 = ln(h, blk['ln3_g'], blk['ln3_b'])
        p12 = n3 @ blk['w_ff1'] + blk['b_ff1']
        ff_inner = blk['w_ff2'].shape[0]
        a, gate = p12[..., :ff_inner], p12[..., ff_inner:]
        h = (a * _gelu_tanh(gate)) @ blk['w_ff2'] + blk['b_ff2'] + h

    y = h @ params['w_out'] + params['b_out']
    y = jnp.transpose(y.reshape(b, hh, ww, c), (0, 3, 1, 2))
    return y + x_in


if __name__ == "__main__":
    key = jax.random.PRNGKey(0)
    B, C, H, W = 2, 32, 8, 8                 # GroupNorm(32, C) requires C % 32 == 0
    N_HEADS, D_HEAD = 2, 16
    INNER = N_HEADS * D_HEAD                 # 32
    CTX_LEN, CTX_DIM = 8, 48
    FF_INNER = 4 * INNER                     # 128

    keys = jax.random.split(key, 32)

    def nrm(k, shape, scale=0.15):
        return scale * jax.random.normal(k, shape, dtype=jnp.float32)

    x = jax.random.normal(keys[0], (B, C, H, W), dtype=jnp.float32)
    context = jax.random.normal(keys[1], (B, CTX_LEN, CTX_DIM), dtype=jnp.float32)

    block = dict(
        ln1_g=1.0 + nrm(keys[6], (INNER,)), ln1_b=nrm(keys[7], (INNER,)),
        w_q1=nrm(keys[8], (INNER, INNER)), w_k1=nrm(keys[9], (INNER, INNER)),
        w_v1=nrm(keys[10], (INNER, INNER)),
        w_o1=nrm(keys[11], (INNER, INNER)), b_o1=nrm(keys[12], (INNER,)),
        ln2_g=1.0 + nrm(keys[13], (INNER,)), ln2_b=nrm(keys[14], (INNER,)),
        w_q2=nrm(keys[15], (INNER, INNER)),
        w_k2=nrm(keys[16], (CTX_DIM, INNER)), w_v2=nrm(keys[17], (CTX_DIM, INNER)),
        w_o2=nrm(keys[18], (INNER, INNER)), b_o2=nrm(keys[19], (INNER,)),
        ln3_g=1.0 + nrm(keys[20], (INNER,)), ln3_b=nrm(keys[21], (INNER,)),
        w_ff1=nrm(keys[22], (INNER, 2 * FF_INNER)), b_ff1=nrm(keys[23], (2 * FF_INNER,)),
        w_ff2=nrm(keys[24], (FF_INNER, INNER)), b_ff2=nrm(keys[25], (INNER,)),
    )
    params = dict(
        gn_gamma=1.0 + nrm(keys[2], (C,)), gn_beta=nrm(keys[3], (C,)),
        w_in=nrm(keys[4], (C, INNER)), b_in=nrm(keys[5], (INNER,)),
        blocks=[block],
        # NOTE: the module zero-initializes proj_out; random weights here so the
        # correctness check is non-trivial (forward semantics are init-agnostic).
        w_out=nrm(keys[26], (INNER, C)), b_out=nrm(keys[27], (C,)),
    )

    # Pack / cast weights once (ff_chunk=64 exercises the multi-chunk FF reduction).
    prepared = prepare_spatial_transformer_params(params, ff_chunk=64)

    out = spatial_transformer_forward(x, context, prepared,
                                      n_heads=N_HEADS, d_head=D_HEAD)
    out = jax.block_until_ready(out)
    assert out.shape == (B, C, H, W), out.shape

    ref = _reference(x, context, params, n_heads=N_HEADS, d_head=D_HEAD)
    err = float(jnp.max(jnp.abs(out - ref)))
    # bf16 matmul operands + approx reciprocal vs. an all-f32 reference.
    assert jnp.allclose(out, ref, atol=5e-2, rtol=5e-2), f"mismatch, max|diff|={err}"

    print("KERNEL_OK")
</pallas_src>

<mosaic_0001>
module attributes {stable_mosaic.version = 11 : i64} {
  func.func @_gn_proj_kernel(%arg0: i32, %arg1: i32, %arg2: memref<1x32x32xf32, #tpu.memory_space<vmem>>, %arg3: memref<1x1x32xf32, #tpu.memory_space<vmem>>, %arg4: memref<1x1x32xf32, #tpu.memory_space<vmem>>, %arg5: memref<32x32xbf16, #tpu.memory_space<vmem>>, %arg6: memref<1x32xf32, #tpu.memory_space<vmem>>, %arg7: memref<1x32x32xf32, #tpu.memory_space<vmem>>) attributes {dimension_semantics = [#tpu.dimension_semantics<parallel>, #tpu.dimension_semantics<parallel>], iteration_bounds = array<i64: 2, 2>, scalar_prefetch = 0 : i64, scratch_operands = 0 : i64, tpu.core_type = #tpu.core_type<tc>, window_params = [{transform_indices = @transform_0, window_bounds = array<i64: 1, 32, 32>}, {transform_indices = @transform_1, window_bounds = array<i64: 1, 1, 32>}, {transform_indices = @transform_2, window_bounds = array<i64: 1, 1, 32>}, {pipeline_mode = #tpu.pipeline_mode<synchronous>, transform_indices = @transform_3, window_bounds = array<i64: 32, 32>}, {pipeline_mode = #tpu.pipeline_mode<synchronous>, transform_indices = @transform_4, window_bounds = array<i64: 1, 32>}, {transform_indices = @transform_5, window_bounds = array<i64: 1, 32, 32>}]} {
    %c0 = arith.constant 0 : index
    %c0_0 = arith.constant 0 : index
    %c0_1 = arith.constant 0 : index
    %0 = vector.load %arg2[%c0, %c0_0, %c0_1] : memref<1x32x32xf32, #tpu.memory_space<vmem>>, vector<1x32x32xf32>
    %1 = vector.shape_cast %0 : vector<1x32x32xf32> to vector<32x32xf32>
    %c0_2 = arith.constant 0 : index
    %c0_3 = arith.constant 0 : index
    %c0_4 = arith.constant 0 : index
    %2 = vector.load %arg3[%c0_2, %c0_3, %c0_4] : memref<1x1x32xf32, #tpu.memory_space<vmem>>, vector<1x1x32xf32>
    %3 = vector.shape_cast %2 : vector<1x1x32xf32> to vector<1x32xf32>
    %4 = vector.broadcast %3 : vector<1x32xf32> to vector<32x32xf32>
    %5 = arith.mulf %1, %4 : vector<32x32xf32>
    %c0_5 = arith.constant 0 : index
    %c0_6 = arith.constant 0 : index
    %c0_7 = arith.constant 0 : index
    %6 = vector.load %arg4[%c0_5, %c0_6, %c0_7] : memref<1x1x32xf32, #tpu.memory_space<vmem>>, vector<1x1x32xf32>
    %7 = vector.shape_cast %6 : vector<1x1x32xf32> to vector<1x32xf32>
    %8 = vector.broadcast %7 : vector<1x32xf32> to vector<32x32xf32>
    %9 = arith.addf %5, %8 : vector<32x32xf32>
    %10 = arith.truncf %9 : vector<32x32xf32> to vector<32x32xbf16>
    %c0_8 = arith.constant 0 : index
    %c0_9 = arith.constant 0 : index
    %11 = vector.load %arg5[%c0_8, %c0_9] : memref<32x32xbf16, #tpu.memory_space<vmem>>, vector<32x32xbf16>
    %cst = arith.constant dense<0.000000e+00> : vector<32x32xf32>
    %12 = tpu.matmul %10, %11, %cst {dimension_numbers = #tpu.dot_dimension_numbers<[1], [0], [0], [1], [0, 0, 1, 1], [], []>} : vector<32x32xbf16>, vector<32x32xbf16>, vector<32x32xf32> -> vector<32x32xf32>
    %c0_10 = arith.constant 0 : index
    %c0_11 = arith.constant 0 : index
    %13 = vector.load %arg6[%c0_10, %c0_11] : memref<1x32xf32, #tpu.memory_space<vmem>>, vector<1x32xf32>
    %14 = vector.broadcast %13 : vector<1x32xf32> to vector<32x32xf32>
    %15 = arith.addf %12, %14 : vector<32x32xf32>
    %c0_12 = arith.constant 0 : index
    %c0_13 = arith.constant 0 : index
    %c0_14 = arith.constant 0 : index
    %16 = vector.load %arg7[%c0_12, %c0_13, %c0_14] : memref<1x32x32xf32, #tpu.memory_space<vmem>>, vector<1x32x32xf32>
    %17 = vector.shape_cast %16 : vector<1x32x32xf32> to vector<32x32xf32>
    %18 = vector.shape_cast %15 : vector<32x32xf32> to vector<1x32x32xf32>
    tpu.vector_store %arg7[%c0_12, %c0_13, %c0_14], %18 {strides = array<i32>} : memref<1x32x32xf32, #tpu.memory_space<vmem>>, vector<1x32x32xf32>,
    return
  }
  func.func @transform_0(%arg0: i32, %arg1: i32) -> (i32, i32, i32) {
    %c0_i32 = arith.constant 0 : i32
    %c0_i32_0 = arith.constant 0 : i32
    return %arg0, %arg1, %c0_i32 : i32, i32, i32
  }
  func.func @transform_1(%arg0: i32, %arg1: i32) -> (i32, i32, i32) {
    %c0_i32 = arith.constant 0 : i32
    %c0_i32_0 = arith.constant 0 : i32
    %c0_i32_1 = arith.constant 0 : i32
    return %arg0, %c0_i32, %c0_i32_0 : i32, i32, i32
  }
  func.func @transform_2(%arg0: i32, %arg1: i32) -> (i32, i32, i32) {
    %c0_i32 = arith.constant 0 : i32
    %c0_i32_0 = arith.constant 0 : i32
    %c0_i32_1 = arith.constant 0 : i32
    return %arg0, %c0_i32, %c0_i32_0 : i32, i32, i32
  }
  func.func @transform_3(%arg0: i32, %arg1: i32) -> (i32, i32) {
    %c0_i32 = arith.constant 0 : i32
    %c0_i32_0 = arith.constant 0 : i32
    %c0_i32_1 = arith.constant 0 : i32
    return %c0_i32, %c0_i32_0 : i32, i32
  }
  func.func @transform_4(%arg0: i32, %arg1: i32) -> (i32, i32) {
    %c0_i32 = arith.constant 0 : i32
    %c0_i32_0 = arith.constant 0 : i32
    %c0_i32_1 = arith.constant 0 : i32
    return %c0_i32, %c0_i32_0 : i32, i32
  }
  func.func @transform_5(%arg0: i32, %arg1: i32) -> (i32, i32, i32) {
    %c0_i32 = arith.constant 0 : i32
    %c0_i32_0 = arith.constant 0 : i32
    return %arg0, %arg1, %c0_i32 : i32, i32, i32
  }
}

</mosaic_0001>

<llo_original>
// kernel: tpu_custom_call.1
$region0: #{tpu_custom_call.1}
  #allocation0 [shape = 'u32[]', space=smem, size = 0x4, offset = 0x4, fixed_abs, tag = 'smem constant byte address 0x4 - core index']
  #allocation1 [shape = 'u32[144,128]{1,0:T(1,128)}', space=vmem, size = 0x12000, scoped, tag = 'internal scratch']
  %s0 = inlined_call_operand.vmem [shape: f32[2,64,32], index: 0, kind: input, shape index: {}]
  %s1 = inlined_call_operand.vmem [shape: f32[2,1,32], index: 1, kind: input, shape index: {}]
  %s2 = inlined_call_operand.vmem [shape: f32[2,1,32], index: 2, kind: input, shape index: {}]
  %s3 = inlined_call_operand.vmem [shape: bf16[32,32], index: 3, kind: input, shape index: {}]
  %s4 = inlined_call_operand.vmem [shape: f32[1,32], index: 4, kind: input, shape index: {}]
  %s5 = inlined_call_operand.vmem [shape: f32[2,64,32], index: 5, kind: output, shape index: {}]
  %s6 = sld [smem:[#allocation0]]
  $region53: #{tpu_custom_call.1} parent=0
    _
  %s8 = ssub.s32 1, %s6
  %s9 = scalar_select 0, %s8, %s6
  loop: start=0, step=1, limit=6
  $region2: #{tpu_custom_call.1} parent=0 // loop_pre_header
    _
  $region3: #{tpu_custom_call.1} parent=0 // loop_header
    %s11 = sphi 0, %s15
    %p12 = scmp.ge.s32.totalorder %s11, 6
    %s18 = sphi 0, %s30
    %s19 = sphi 0, %s26
    %s20 = sphi 0, %s18
    %s21 = sphi 0, %s19
    %s22 = sphi 0, %s20
    %s23 = sphi 0, %s21
    %s35 = sphi 0, %s37
    %s38 = sphi 0, %s35
    %s39 = sphi 0, %s38
    %s55 = sphi 0, %s39
    %s61 = sphi 0, %s63
    %s64 = sphi 0, %s61
    %s65 = sphi 0, %s64
    %s81 = sphi 0, %s65
    %s87 = sphi 0, %s89
    %s90 = sphi 0, %s87
    %s91 = sphi 0, %s90
    %s107 = sphi 0, %s91
    %s111 = sphi 0, %s111
    %s113 = sphi 0, %s111
    %s114 = sphi 0, %s113
    %s128 = sphi 0, %s114
    %s132 = sphi 0, %s132
    %s134 = sphi 0, %s132
    %s135 = sphi 0, %s134
    %s149 = sphi 0, %s135
    %s157 = sphi 0, %s159
    %s160 = sphi 0, %s157
    %s161 = sphi 0, %s160
    %s177 = sphi 0, %s161
  $region4: #{tpu_custom_call.1} parent=0 // loop_header_branch
    %14 = sbr.rel (%p12) target = $region8
  $region5: #{tpu_custom_call.1} parent=0 // loop_body
    %s16 = ssub.s32 %s11, 1
    %s17 = ssub.s32 %s11, 2
    %s24 = sadd.s32 1, %s19
    %p25 = scmp.ge.s32.totalorder %s24, 2
    %s26 = scalar_select %p25, 0, %s24
    %s27 = sadd.s32 1, %s18
    %s28 = scalar_select %p25, %s27, %s18
    %p29 = scmp.ge.s32.totalorder %s28, 2
    %s30 = scalar_select %p29, 0, %s28
    %s31 = ssub.s32 %s18, %s30
    %s32 = ssub.s32 %s19, %s26
    %s33 = sor.u32 %s31, %s32
    %p34 = scmp.eq.s32.totalorder %s33, 0
    %s36 = sadd.s32 %s35, 1
    %s37 = scalar_select %p34, %s35, %s36
    %p40 = pneg %p34
    %p41 = scmp.eq.s32.totalorder %s11, 3
    %p42 = por %p40, %p41
    %p43 = scmp.ne.s32.totalorder %s35, %s38
    %p44 = scmp.eq.s32.totalorder %s11, 0
    %p45 = por %p43, %p44
    %p46 = scmp.ne.s32.totalorder %s35, %s38
    %p47 = scmp.eq.s32.totalorder %s16, 3
    %p48 = por %p46, %p47
    %p49 = scmp.ne.s32.totalorder %s38, %s39
    %p50 = scmp.eq.s32.totalorder %s16, 0
    %p51 = por %p49, %p50
    %p52 = scmp.ne.s32.totalorder %s38, %s39
    %p53 = scmp.eq.s32.totalorder %s17, 3
    %p54 = por %p52, %p53
    %p56 = scmp.ne.s32.totalorder %s39, %s55
    %p57 = scmp.eq.s32.totalorder %s17, 0
    %p58 = por %p56, %p57
    %s59 = ssub.s32 %s18, %s30
    %p60 = scmp.eq.s32.totalorder %s59, 0
    %s62 = sadd.s32 %s61, 1
    %s63 = scalar_select %p60, %s61, %s62
    %p66 = pneg %p60
    %p67 = scmp.eq.s32.totalorder %s11, 3
    %p68 = por %p66, %p67
    %p69 = scmp.ne.s32.totalorder %s61, %s64
    %p70 = scmp.eq.s32.totalorder %s11, 0
    %p71 = por %p69, %p70
    %p72 = scmp.ne.s32.totalorder %s61, %s64
    %p73 = scmp.eq.s32.totalorder %s16, 3
    %p74 = por %p72, %p73
    %p75 = scmp.ne.s32.totalorder %s64, %s65
    %p76 = scmp.eq.s32.totalorder %s16, 0
    %p77 = por %p75, %p76
    %p78 = scmp.ne.s32.totalorder %s64, %s65
    %p79 = scmp.eq.s32.totalorder %s17, 3
    %p80 = por %p78, %p79
    %p82 = scmp.ne.s32.totalorder %s65, %s81
    %p83 = scmp.eq.s32.totalorder %s17, 0
    %p84 = por %p82, %p83
    %s85 = ssub.s32 %s18, %s30
    %p86 = scmp.eq.s32.totalorder %s85, 0
    %s88 = sadd.s32 %s87, 1
    %s89 = scalar_select %p86, %s87, %s88
    %p92 = pneg %p86
    %p93 = scmp.eq.s32.totalorder %s11, 3
    %p94 = por %p92, %p93
    %p95 = scmp.ne.s32.totalorder %s87, %s90
    %p96 = scmp.eq.s32.totalorder %s11, 0
    %p97 = por %p95, %p96
    %p98 = scmp.ne.s32.totalorder %s87, %s90
    %p99 = scmp.eq.s32.totalorder %s16, 3
    %p100 = por %p98, %p99
    %p101 = scmp.ne.s32.totalorder %s90, %s91
    %p102 = scmp.eq.s32.totalorder %s16, 0
    %p103 = por %p101, %p102
    %p104 = scmp.ne.s32.totalorder %s90, %s91
    %p105 = scmp.eq.s32.totalorder %s17, 3
    %p106 = por %p104, %p105
    %p108 = scmp.ne.s32.totalorder %s91, %s107
    %p109 = scmp.eq.s32.totalorder %s17, 0
    %p110 = por %p108, %p109
    %s112 = sadd.s32 %s111, 1
    %p115 = scmp.eq.s32.totalorder %s11, 3
    %p116 = scmp.ne.s32.totalorder %s111, %s113
    %p117 = scmp.eq.s32.totalorder %s11, 0
    %p118 = por %p116, %p117
    %p119 = scmp.ne.s32.totalorder %s111, %s113
    %p120 = scmp.eq.s32.totalorder %s16, 3
    %p121 = por %p119, %p120
    %p122 = scmp.ne.s32.totalorder %s113, %s114
    %p123 = scmp.eq.s32.totalorder %s16, 0
    %p124 = por %p122, %p123
    %p125 = scmp.ne.s32.totalorder %s113, %s114
    %p126 = scmp.eq.s32.totalorder %s17, 3
    %p127 = por %p125, %p126
    %p129 = scmp.ne.s32.totalorder %s114, %s128
    %p130 = scmp.eq.s32.totalorder %s17, 0
    %p131 = por %p129, %p130
    %s133 = sadd.s32 %s132, 1
    %p136 = scmp.eq.s32.totalorder %s11, 3
    %p137 = scmp.ne.s32.totalorder %s132, %s134
    %p138 = scmp.eq.s32.totalorder %s11, 0
    %p139 = por %p137, %p138
    %p140 = scmp.ne.s32.totalorder %s132, %s134
    %p141 = scmp.eq.s32.totalorder %s16, 3
    %p142 = por %p140, %p141
    %p143 = scmp.ne.s32.totalorder %s134, %s135
    %p144 = scmp.eq.s32.totalorder %s16, 0
    %p145 = por %p143, %p144
    %p146 = scmp.ne.s32.totalorder %s134, %s135
    %p147 = scmp.eq.s32.totalorder %s17, 3
    %p148 = por %p146, %p147
    %p150 = scmp.ne.s32.totalorder %s135, %s149
    %p151 = scmp.eq.s32.totalorder %s17, 0
    %p152 = por %p150, %p151
    %s153 = ssub.s32 %s18, %s30
    %s154 = ssub.s32 %s19, %s26
    %s155 = sor.u32 %s153, %s154
    %p156 = scmp.eq.s32.totalorder %s155, 0
    %s158 = sadd.s32 %s157, 1
    %s159 = scalar_select %p156, %s157, %s158
    %p162 = pneg %p156
    %p163 = scmp.eq.s32.totalorder %s11, 3
    %p164 = por %p162, %p163
    %p165 = scmp.ne.s32.totalorder %s157, %s160
    %p166 = scmp.eq.s32.totalorder %s11, 0
    %p167 = por %p165, %p166
    %p168 = scmp.ne.s32.totalorder %s157, %s160
    %p169 = scmp.eq.s32.totalorder %s16, 3
    %p170 = por %p168, %p169
    %p171 = scmp.ne.s32.totalorder %s160, %s161
    %p172 = scmp.eq.s32.totalorder %s16, 0
    %p173 = por %p171, %p172
    %p174 = scmp.ne.s32.totalorder %s160, %s161
    %p175 = scmp.eq.s32.totalorder %s17, 3
    %p176 = por %p174, %p175
    %p178 = scmp.ne.s32.totalorder %s161, %s177
    %p179 = scmp.eq.s32.totalorder %s17, 0
    %p180 = por %p178, %p179
    %p181 = scmp.le.s32.totalorder 1, %s11
    %p182 = scmp.lt.s32.totalorder %s11, 5
    %p183 = pnand %p181, %p182
    %p184 = pneg %p183
    // Predicated region
    $region9: #{tpu_custom_call.1} parent=5 // pred_check
      _
    $region10: #{tpu_custom_call.1} parent=5 // pred_check_branch
      %186 = sbr.rel (%p183) target = $region12
    $region11: #{tpu_custom_call.1} parent=5 // pred_region
      %s187 = ssub.s32 %s11, 1
      // Predicated region
      $region13: #{tpu_custom_call.1} parent=11 // pred_check
        %p188 = pneg %p124
      $region14: #{tpu_custom_call.1} parent=11 // pred_check_branch
        %190 = sbr.rel (%p188) target = $region16
      $region15: #{tpu_custom_call.1} parent=11 // pred_region
        _
      $region16: #{tpu_custom_call.1} parent=11 // pred_fallthru
        _
      // Predicated region
      $region17: #{tpu_custom_call.1} parent=11 // pred_check
        %p191 = pneg %p145
      $region18: #{tpu_custom_call.1} parent=11 // pred_check_branch
        %193 = sbr.rel (%p191) target = $region20
      $region19: #{tpu_custom_call.1} parent=11 // pred_region
        _
      $region20: #{tpu_custom_call.1} parent=11 // pred_fallthru
        _
    $region12: #{tpu_custom_call.1} parent=5 // pred_fallthru
      _
    %p194 = scmp.lt.s32.totalorder %s11, 4
    // Predicated region
    $region21: #{tpu_custom_call.1} parent=5 // pred_check
      %p195 = pneg %p194
    $region22: #{tpu_custom_call.1} parent=5 // pred_check_branch
      %197 = sbr.rel (%p195) target = $region24
    $region23: #{tpu_custom_call.1} parent=5 // pred_region
      // Predicated region
      $region25: #{tpu_custom_call.1} parent=23 // pred_check
        %p198 = pneg %p45
      $region26: #{tpu_custom_call.1} parent=23 // pred_check_branch
        %200 = sbr.rel (%p198) target = $region28
      $region27: #{tpu_custom_call.1} parent=23 // pred_region
        %s201 = smul.u32 4, %s19
        %p202 = scmp.lt.s32.totalorder %s18, 1
        %s203 = scalar_select %p202, %s18, 1
        %p204 = scmp.lt.s32.totalorder %s201, 7
        %s205 = scalar_select %p204, %s201, 7
        %s206 = smul.addr %s203, 8
        %s207 = sadd.s32 %s205, %s206
        %s208 = smul.addr %s207, 8
        %s209 = scalar_lea.vmem %s0, %s208
        %s210 = smul.u32 4, %s19
      $region28: #{tpu_custom_call.1} parent=23 // pred_fallthru
        _
      // Predicated region
      $region29: #{tpu_custom_call.1} parent=23 // pred_check
        %p211 = pneg %p71
      $region30: #{tpu_custom_call.1} parent=23 // pred_check_branch
        %213 = sbr.rel (%p211) target = $region32
      $region31: #{tpu_custom_call.1} parent=23 // pred_region
        %p214 = scmp.lt.s32.totalorder %s18, 1
        %s215 = scalar_select %p214, %s18, 1
        %s216 = scalar_lea.vmem %s1, %s215
      $region32: #{tpu_custom_call.1} parent=23 // pred_fallthru
        _
      // Predicated region
      $region33: #{tpu_custom_call.1} parent=23 // pred_check
        %p217 = pneg %p97
      $region34: #{tpu_custom_call.1} parent=23 // pred_check_branch
        %219 = sbr.rel (%p217) target = $region36
      $region35: #{tpu_custom_call.1} parent=23 // pred_region
        %p220 = scmp.lt.s32.totalorder %s18, 1
        %s221 = scalar_select %p220, %s18, 1
        %s222 = scalar_lea.vmem %s2, %s221
      $region36: #{tpu_custom_call.1} parent=23 // pred_fallthru
        _
    $region24: #{tpu_custom_call.1} parent=5 // pred_fallthru
      _
    %p223 = scmp.le.s32.totalorder 1, %s11
    %p224 = scmp.lt.s32.totalorder %s11, 5
    %p225 = pnand %p223, %p224
    %p226 = pneg %p225
    // Predicated region
    $region37: #{tpu_custom_call.1} parent=5 // pred_check
      _
    $region38: #{tpu_custom_call.1} parent=5 // pred_check_branch
      %228 = sbr.rel (%p225) target = $region40
    $region39: #{tpu_custom_call.1} parent=5 // pred_region
      %s229 = ssub.s32 %s11, 1
      %s230 = smul.u32 4, %s21
      %p231 = scmp.lt.s32.totalorder %s20, 1
      %s232 = scalar_select %p231, %s20, 1
      %p233 = scmp.lt.s32.totalorder %s230, 7
      %s234 = scalar_select %p233, %s230, 7
      %s235 = smul.addr %s232, 8
      %s236 = sadd.s32 %s234, %s235
      %s237 = smul.addr %s236, 8
      %s238 = scalar_lea.vmem %s0, %s237
      %p239 = pneg %p51
      %p240 = pneg %p48
      %p241 = scmp.lt.s32.totalorder %s20, 1
      %s242 = scalar_select %p241, %s20, 1
      %s243 = scalar_lea.vmem %s1, %s242
      %p244 = pneg %p77
      %p245 = pneg %p74
      %p246 = scmp.lt.s32.totalorder %s20, 1
      %s247 = scalar_select %p246, %s20, 1
      %s248 = scalar_lea.vmem %s2, %s247
      %p249 = pneg %p103
      %p250 = pneg %p100
      %p251 = pneg %p124
      %p252 = pneg %p121
      %p253 = pneg %p145
      %p254 = pneg %p142
      %p255 = pneg %p173
      %p256 = pneg %p170
      %s257 = smul.u32 4, %s21
      %p258 = scmp.lt.s32.totalorder %s20, 1
      %s259 = scalar_select %p258, %s20, 1
      %p260 = scmp.lt.s32.totalorder %s257, 7
      %s261 = scalar_select %p260, %s257, 7
      %s262 = smul.addr %s259, 8
      %s263 = sadd.s32 %s261, %s262
      %s264 = smul.addr %s263, 8
      %s265 = scalar_lea.vmem %s5, %s264
      %s266 = smul.u32 4, %s21
      %p267 = scmp.lt.s32.totalorder %s20, 1
      %s268 = scalar_select %p267, %s20, 1
      %p269 = scmp.lt.s32.totalorder %s266, 7
      %s270 = scalar_select %p269, %s266, 7
      %s271 = smul.addr %s268, 8
      %s272 = sadd.s32 %s270, %s271
      %s273 = smul.addr %s272, 8
      %s274 = scalar_lea.vmem %s0, %s273
      %s275 = smul.u32 4, %s21
      %p276 = scmp.lt.s32.totalorder %s20, 1
      %s277 = scalar_select %p276, %s20, 1
      %s278 = scalar_lea.vmem %s1, %s277
      %p279 = scmp.lt.s32.totalorder %s20, 1
      %s280 = scalar_select %p279, %s20, 1
      %s281 = scalar_lea.vmem %s2, %s280
      %s282 = smul.u32 4, %s21
      %p283 = scmp.lt.s32.totalorder %s20, 1
      %s284 = scalar_select %p283, %s20, 1
      %p285 = scmp.lt.s32.totalorder %s282, 7
      %s286 = scalar_select %p285, %s282, 7
      %s287 = smul.addr %s284, 8
      %s288 = sadd.s32 %s286, %s287
      %s289 = smul.addr %s288, 8
      %s290 = scalar_lea.vmem %s5, %s289
      %s291 = smul.u32 4, %s21
      %v293 = vld [vmem:[%s274] sm:$0xff]
      %v294 = vld [vmem:[%s274 + $0x8] sm:$0xff]
      %v295 = vld [vmem:[%s274 + $0x10] sm:$0xff]
      %v296 = vld [vmem:[%s274 + $0x18] sm:$0xff]
      %v297 = vld [vmem:[%s278] sm:$0x1]
      %v299 = vlaneseq
      %v300 = vshrl.u32 %v299, 7
      %v301 = vsub.s32 0, %v300
      %v302 = vrot.slane %v297, %v301
      %v304 = vmul.f32 %v293, %v302
      %v305 = vmul.f32 %v294, %v302
      %v306 = vmul.f32 %v295, %v302
      %v307 = vmul.f32 %v296, %v302
      %v308 = vld [vmem:[%s281] sm:$0x1]
      %v310 = vlaneseq
      %v311 = vshrl.u32 %v310, 7
      %v312 = vsub.s32 0, %v311
      %v313 = vrot.slane %v308, %v312
      %v315 = vadd.f32 %v304, %v313
      %v316 = vadd.f32 %v305, %v313
      %v317 = vadd.f32 %v306, %v313
      %v318 = vadd.f32 %v307, %v313
      %v319 = vpack.c.bf16 %v316, %v315
      %v320 = vpack.c.bf16 %v318, %v317
      %v321 = vld [vmem:[%s3] sm:$0xf]
      %v322 = vld [vmem:[%s3 + $0x4] sm:$0xf]
      %v323 = vld [vmem:[%s3 + $0x8] sm:$0xf]
      %v324 = vld [vmem:[%s3 + $0xc] sm:$0xf]
      %v325 = vld [vmem:[%s4] sm:$0x1]
      %v327 = vlaneseq
      %v328 = vshrl.u32 %v327, 7
      %v329 = vsub.s32 0, %v328
      %v330 = vrot.slane %v325, %v329
      %v336 = vunpack.c.l.b16 %v321
      %v337 = vunpack.c.l.b16 %v322
      %v338 = vunpack.c.l.b16 %v323
      %v339 = vunpack.c.l.b16 %v324
      %v340 = vpack.c.b16 %v337, %v336
      %v341 = vpack.c.b16 %v339, %v338
      %vm344 = vcmask 261120
      %v346 = vsel %vm344, %v319, 0
      %v349 = vsel %vm344, %v320, 0
      %351 = vmatprep.subr.bf16.mxu0 0
      %352 = vmatpush1.bf16.msra.mxu0 %v340
      %353 = vmatprep.subr.bf16.mxu0 0
      %354 = vmatpush1.bf16.msra.mxu0 %v341
      %355 = vmatprep.subr.bf16.mxu0 0
      %356 = vmatpush1.bf16.msra.mxu0 0
      %357 = vmatprep.subr.bf16.mxu0 0
      %358 = vmatpush1.bf16.msra.mxu0 0
      %359 = vmatprep.subr.bf16.mxu0 0
      %360 = vmatpush1.bf16.msra.mxu0 0
      %361 = vmatprep.subr.bf16.mxu0 0
      %362 = vmatpush1.bf16.msra.mxu0 0
      %363 = vmatprep.subr.bf16.mxu0 0
      %364 = vmatpush1.bf16.msra.mxu0 0
      %365 = vmatprep.subr.bf16.mxu0 0
      %366 = vmatpush1.bf16.msra.mxu0 0
      %367 = vmatprep.subr.bf16.mxu0 0
      %368 = vmatpush1.bf16.msra.mxu0 0
      %369 = vmatprep.subr.bf16.mxu0 0
      %370 = vmatpush1.bf16.msra.mxu0 0
      %371 = vmatprep.subr.bf16.mxu0 0
      %372 = vmatpush1.bf16.msra.mxu0 0
      %373 = vmatprep.subr.bf16.mxu0 0
      %374 = vmatpush1.bf16.msra.mxu0 0
      %375 = vmatprep.subr.bf16.mxu0 0
      %376 = vmatpush1.bf16.msra.mxu0 0
      %377 = vmatprep.subr.bf16.mxu0 0
      %378 = vmatpush1.bf16.msra.mxu0 0
      %379 = vmatprep.subr.bf16.mxu0 0
      %380 = vmatpush1.bf16.msra.mxu0 0
      %381 = vmatprep.subr.bf16.mxu0 0
      %382 = vmatpush1.bf16.msra.mxu0 0
      %383 = vmatprep.mubr.bf16.mxu0 0
      %384 = vmatmul.mubr.bf16.gmra.mrb[0].mxu0 %v346
      %v385 = vpop.f32.mrb[0].mxu0
      %v386 = vadd.f32 %v330, %v385
      %v387 = vpop.f32.mrb[0].mxu0
      %v388 = vpop.f32.mrb[0].mxu0
      %v389 = vadd.f32 %v330, %v388
      %v390 = vpop.f32.mrb[0].mxu0
      %391 = vmatprep.mubr.bf16.mxu0 0
      %392 = vmatmul.mubr.bf16.gmra.mrb[0].mxu0 %v349
      %v393 = vpop.f32.mrb[0].mxu0
      %v394 = vadd.f32 %v330, %v393
      %v395 = vpop.f32.mrb[0].mxu0
      %v396 = vpop.f32.mrb[0].mxu0
      %v397 = vadd.f32 %v330, %v396
      %v398 = vpop.f32.mrb[0].mxu0
      %399 = vdwg.mxu0
      %400 = vst.msk [vmem:[%s290] sm:$0xff] %vm344, %v386
      %401 = vst.msk [vmem:[%s290 + $0x8] sm:$0xff] %vm344, %v389
      %402 = vst.msk [vmem:[%s290 + $0x10] sm:$0xff] %vm344, %v394
      %403 = vst.msk [vmem:[%s290 + $0x18] sm:$0xff] %vm344, %v397
      %s404 = smul.u32 4, %s21
      %p405 = scmp.lt.s32.totalorder %s20, 1
      %s406 = scalar_select %p405, %s20, 1
      %p407 = scmp.lt.s32.totalorder %s404, 7
      %s408 = scalar_select %p407, %s404, 7
      %s409 = smul.addr %s406, 8
      %s410 = sadd.s32 %s408, %s409
      %s411 = smul.addr %s410, 8
      %s412 = scalar_lea.vmem %s5, %s411
      // Predicated region
      $region41: #{tpu_custom_call.1} parent=39 // pred_check
        %p413 = pneg %p170
      $region42: #{tpu_custom_call.1} parent=39 // pred_check_branch
        %415 = sbr.rel (%p413) target = $region44
      $region43: #{tpu_custom_call.1} parent=39 // pred_region
        %s416 = smul.u32 4, %s21
      $region44: #{tpu_custom_call.1} parent=39 // pred_fallthru
        _
    $region40: #{tpu_custom_call.1} parent=5 // pred_fallthru
      _
    %p417 = scmp.le.s32.totalorder 2, %s11
    // Predicated region
    $region45: #{tpu_custom_call.1} parent=5 // pred_check
      %p418 = pneg %p417
    $region46: #{tpu_custom_call.1} parent=5 // pred_check_branch
      %420 = sbr.rel (%p418) target = $region48
    $region47: #{tpu_custom_call.1} parent=5 // pred_region
      %s421 = ssub.s32 %s11, 2
      // Predicated region
      $region49: #{tpu_custom_call.1} parent=47 // pred_check
        %p422 = pneg %p176
      $region50: #{tpu_custom_call.1} parent=47 // pred_check_branch
        %424 = sbr.rel (%p422) target = $region52
      $region51: #{tpu_custom_call.1} parent=47 // pred_region
        %s425 = smul.u32 4, %s23
        %p426 = scmp.lt.s32.totalorder %s22, 1
        %s427 = scalar_select %p426, %s22, 1
        %p428 = scmp.lt.s32.totalorder %s425, 7
        %s429 = scalar_select %p428, %s425, 7
        %s430 = smul.addr %s427, 8
        %s431 = sadd.s32 %s429, %s430
        %s432 = smul.addr %s431, 8
        %s433 = scalar_lea.vmem %s5, %s432
      $region52: #{tpu_custom_call.1} parent=47 // pred_fallthru
        _
    $region48: #{tpu_custom_call.1} parent=5 // pred_fallthru
      _
  $region6: #{tpu_custom_call.1} parent=0 // loop_footer
    %s15 = sadd.s32 1, %s11
  $region7: #{tpu_custom_call.1} parent=0 // loop_footer_branch
    %10 = sbr.rel target = $region3
  $region8: #{tpu_custom_call.1} parent=0 // loop_exit
    _

</llo_original>
